<compile_context>
chip_gen: v7x
topology: tpu7x:2x2x1
jax: 0.10.0
libtpu: 0.0.40
codegen_flags: <defaults>
</compile_context>

<pallas_src>
import jax
import jax.numpy as jnp
from jax.experimental import pallas as pl
from jax.experimental.pallas import tpu as pltpu


def _shift_up(a):     # a[i-1, :], zeros at i == 0          (sublane shift)
    return jnp.concatenate([jnp.zeros_like(a[:1, :]), a[:-1, :]], axis=0)


def _shift_down(a):   # a[i+1, :], zeros at i == rows-1     (sublane shift)
    return jnp.concatenate([a[1:, :], jnp.zeros_like(a[:1, :])], axis=0)


def _shift_left(a):   # a[:, j-1], zeros at j == 0          (lane shift)
    return jnp.concatenate([jnp.zeros_like(a[:, :1]), a[:, :-1]], axis=1)


def _shift_right(a):  # a[:, j+1], zeros at j == W-1        (lane shift)
    return jnp.concatenate([a[:, 1:], jnp.zeros_like(a[:, :1])], axis=1)


def _make_sobel_kernel(img_h: int):
    """Kernel for one (TR, W) slab of flattened rows, TR a multiple of img_h."""

    def kernel(x_ref, o_ref):
        x = x_ref[...].astype(jnp.float32)        # cast in-register, not in HBM
        tr = x.shape[0]

        # --- vertical (sublane) pass, shared by gx and gy ---
        xu = _shift_up(x)                          # x[i-1, j]
        xd = _shift_down(x)                        # x[i+1, j]

        if tr > img_h:
            # Several images stacked along rows inside this block: zero the
            # vertical shifts that crossed an image boundary (these positions
            # are the conv's zero-padding rows).  (TR,1) iota -> negligible.
            row = jax.lax.broadcasted_iota(jnp.int32, (tr, 1), 0) % img_h
            xu = jnp.where(row == 0, 0.0, xu)
            xd = jnp.where(row == img_h - 1, 0.0, xd)
        # tr == img_h: block edges == image edges; concat zero-fill is already
        # exactly the conv zero padding.

        s = xu + 2.0 * x + xd                      # smoothing column of Sobel-X
        d = xd - xu                                # difference column of Sobel-Y

        # --- horizontal (lane) pass ---
        # Block width == image width, so lane block edges == image edges and
        # the zero columns injected by the shifts are the conv zero padding.
        gx = _shift_right(s) - _shift_left(s)      # [[-1,0,1],[-2,0,2],[-1,0,1]]
        gy = _shift_left(d) + 2.0 * d + _shift_right(d)  # [[-1,-2,-1],[0,0,0],[1,2,1]]

        # sqrt -> EUP slot, effectively free on a mem-bound kernel.
        # TODO(synk): if this is differentiated during training, add an eps or
        # a custom_vjp -- sqrt(0) has an undefined gradient.
        o_ref[...] = jnp.sqrt(gx * gx + gy * gy).astype(o_ref.dtype)

    return kernel


def _images_per_block(n, h, w, in_itemsize, out_itemsize,
                      target_tile_bytes=4 << 20, min_steps=2):
    """Images per grid step (block height = bn*H rows), preferring
    (a) tiles <= target bytes, (b) >= min_steps grid steps, (c) bigger tiles."""
    per_image = h * w * (in_itemsize + out_itemsize)
    # bn must divide N; block height bn*H must be a multiple of 8 (sublane
    # tiling rule) unless the block covers the whole row axis.
    candidates = [bn for bn in range(1, n + 1)
                  if n % bn == 0 and ((bn * h) % 8 == 0 or bn == n)]
    if not candidates:
        candidates = [n]
    fitting = [bn for bn in candidates if bn * per_image <= target_tile_bytes]
    if fitting:
        candidates = fitting
    multi = [bn for bn in candidates if n // bn >= min_steps]
    if multi:
        candidates = multi
    return max(candidates)


def sobel_filter(x):
    """x: (N, 1, H, W) float -> (N, 1, H, W) Sobel gradient magnitude."""
    assert x.ndim == 4, "expected NCHW input"
    N, C, H, W = x.shape
    assert C == 1, "SobelFilter expects a single input channel (Conv2d(1, 1, ...))"

    out_dtype = x.dtype
    in_itemsize = jnp.dtype(x.dtype).itemsize
    out_itemsize = jnp.dtype(out_dtype).itemsize

    # Free, contiguous reshape: no transpose, no extra HBM pass.
    rows = N * H
    x2 = x.reshape(rows, W)

    bn = _images_per_block(N, H, W, in_itemsize, out_itemsize)
    tr = bn * H                 # rows per block (multiple of H -> no halo DMA)
    g = N // bn                 # grid steps (>=2 whenever N>=2 and tiles fit)
    # TODO(synk): for a single very large image (bn==1 tile exceeding VMEM),
    # tile H inside the image with a 1-row halo instead of one block per image.

    in_tile = tr * W * in_itemsize
    out_tile = tr * W * out_itemsize
    # Double-buffered in+out with ~2x headroom, capped at v7x physical VMEM.
    vmem_limit = int(min(64 << 20, max(8 << 20, 4 * (in_tile + out_tile))))

    out2 = pl.pallas_call(
        _make_sobel_kernel(H),
        out_shape=jax.ShapeDtypeStruct((rows, W), out_dtype),
        grid_spec=pltpu.PrefetchScalarGridSpec(
            num_scalar_prefetch=0,
            grid=(g,),
            in_specs=[pl.BlockSpec((tr, W), lambda i: (i, 0))],
            out_specs=pl.BlockSpec((tr, W), lambda i: (i, 0)),
        ),
        compiler_params=pltpu.CompilerParams(
            dimension_semantics=("parallel",),
            vmem_limit_bytes=vmem_limit,
        ),
        cost_estimate=pl.CostEstimate(
            flops=12 * N * H * W,
            transcendentals=N * H * W,
            bytes_accessed=N * H * W * (in_itemsize + out_itemsize),
        ),
    )(x2)

    return out2.reshape(N, 1, H, W)   # free reshape back to NCHW


def _sobel_reference(x):
    """Pure-JAX reference (conv_general_dilated), mirrors the PyTorch forward."""
    x = x.astype(jnp.float32)
    kx = jnp.array([[-1.0, 0.0, 1.0], [-2.0, 0.0, 2.0], [-1.0, 0.0, 1.0]],
                   dtype=jnp.float32)[None, None]
    ky = jnp.array([[-1.0, -2.0, -1.0], [0.0, 0.0, 0.0], [1.0, 2.0, 1.0]],
                   dtype=jnp.float32)[None, None]
    dn = jax.lax.conv_dimension_numbers(x.shape, kx.shape, ("NCHW", "OIHW", "NCHW"))
    gx = jax.lax.conv_general_dilated(x, kx, (1, 1), ((1, 1), (1, 1)),
                                      dimension_numbers=dn)
    gy = jax.lax.conv_general_dilated(x, ky, (1, 1), ((1, 1), (1, 1)),
                                      dimension_numbers=dn)
    return jnp.sqrt(gx ** 2 + gy ** 2)


if __name__ == "__main__":
    k0, k1 = jax.random.split(jax.random.PRNGKey(0))

    # Small shape implied by the module: single channel, small batch/spatial.
    # N=2, H=16 -> bn=1, 2 parallel grid steps; lane dim = W (full width).
    x = jax.random.normal(k0, (2, 1, 16, 16), dtype=jnp.float32)
    out = jax.block_until_ready(sobel_filter(x))
    ref = _sobel_reference(x)
    assert out.shape == ref.shape == (2, 1, 16, 16)
    assert jnp.allclose(out, ref, atol=1e-4, rtol=1e-5), "mismatch (single image per block)"

    # Batched, lane-dense case: bn=2 -> two images per block, exercising the
    # in-block image-boundary row mask, with 2 parallel grid steps.
    x2 = jax.random.normal(k1, (4, 1, 32, 128), dtype=jnp.float32)
    out2 = jax.block_until_ready(sobel_filter(x2))
    ref2 = _sobel_reference(x2)
    assert jnp.allclose(out2, ref2, atol=1e-4, rtol=1e-5), "mismatch (multi image per block)"

    print("KERNEL_OK")
</pallas_src>

<mosaic_0001>
module attributes {stable_mosaic.version = 11 : i64} {
  func.func @kernel(%arg0: i32, %arg1: memref<16x16xf32, #tpu.memory_space<vmem>>, %arg2: memref<16x16xf32, #tpu.memory_space<vmem>>) attributes {dimension_semantics = [#tpu.dimension_semantics<parallel>], iteration_bounds = array<i64: 2>, scalar_prefetch = 0 : i64, scratch_operands = 0 : i64, tpu.core_type = #tpu.core_type<tc>, window_params = [{transform_indices = @transform_0, window_bounds = array<i64: 16, 16>}, {transform_indices = @transform_1, window_bounds = array<i64: 16, 16>}]} {
    %c0 = arith.constant 0 : index
    %c0_0 = arith.constant 0 : index
    %0 = vector.load %arg1[%c0, %c0_0] : memref<16x16xf32, #tpu.memory_space<vmem>>, vector<16x16xf32>
    %cst = arith.constant 0.000000e+00 : f32
    %1 = vector.broadcast %cst : f32 to vector<1x16xf32>
    %2 = vector.extract_strided_slice %0 {offsets = [0, 0], sizes = [15, 16], strides = [1, 1]} : vector<16x16xf32> to vector<15x16xf32>
    %3 = tpu.concatenate %1, %2 in 0 : vector<1x16xf32>, vector<15x16xf32> -> vector<16x16xf32>
    %4 = vector.extract_strided_slice %0 {offsets = [1, 0], sizes = [15, 16], strides = [1, 1]} : vector<16x16xf32> to vector<15x16xf32>
    %cst_1 = arith.constant 0.000000e+00 : f32
    %5 = vector.broadcast %cst_1 : f32 to vector<1x16xf32>
    %6 = tpu.concatenate %4, %5 in 0 : vector<15x16xf32>, vector<1x16xf32> -> vector<16x16xf32>
    %cst_2 = arith.constant 2.000000e+00 : f32
    %7 = vector.broadcast %cst_2 : f32 to vector<16x16xf32>
    %8 = arith.mulf %7, %0 : vector<16x16xf32>
    %9 = arith.addf %3, %8 : vector<16x16xf32>
    %10 = arith.addf %9, %6 : vector<16x16xf32>
    %11 = arith.subf %6, %3 : vector<16x16xf32>
    %12 = vector.extract_strided_slice %10 {offsets = [0, 1], sizes = [16, 15], strides = [1, 1]} : vector<16x16xf32> to vector<16x15xf32>
    %cst_3 = arith.constant 0.000000e+00 : f32
    %13 = vector.broadcast %cst_3 : f32 to vector<16x1xf32>
    %14 = tpu.concatenate %12, %13 in 1 : vector<16x15xf32>, vector<16x1xf32> -> vector<16x16xf32>
    %cst_4 = arith.constant 0.000000e+00 : f32
    %15 = vector.broadcast %cst_4 : f32 to vector<16x1xf32>
    %16 = vector.extract_strided_slice %10 {offsets = [0, 0], sizes = [16, 15], strides = [1, 1]} : vector<16x16xf32> to vector<16x15xf32>
    %17 = tpu.concatenate %15, %16 in 1 : vector<16x1xf32>, vector<16x15xf32> -> vector<16x16xf32>
    %18 = arith.subf %14, %17 : vector<16x16xf32>
    %cst_5 = arith.constant 0.000000e+00 : f32
    %19 = vector.broadcast %cst_5 : f32 to vector<16x1xf32>
    %20 = vector.extract_strided_slice %11 {offsets = [0, 0], sizes = [16, 15], strides = [1, 1]} : vector<16x16xf32> to vector<16x15xf32>
    %21 = tpu.concatenate %19, %20 in 1 : vector<16x1xf32>, vector<16x15xf32> -> vector<16x16xf32>
    %cst_6 = arith.constant 2.000000e+00 : f32
    %22 = vector.broadcast %cst_6 : f32 to vector<16x16xf32>
    %23 = arith.mulf %22, %11 : vector<16x16xf32>
    %24 = arith.addf %21, %23 : vector<16x16xf32>
    %25 = vector.extract_strided_slice %11 {offsets = [0, 1], sizes = [16, 15], strides = [1, 1]} : vector<16x16xf32> to vector<16x15xf32>
    %cst_7 = arith.constant 0.000000e+00 : f32
    %26 = vector.broadcast %cst_7 : f32 to vector<16x1xf32>
    %27 = tpu.concatenate %25, %26 in 1 : vector<16x15xf32>, vector<16x1xf32> -> vector<16x16xf32>
    %28 = arith.addf %24, %27 : vector<16x16xf32>
    %29 = arith.mulf %18, %18 : vector<16x16xf32>
    %30 = arith.mulf %28, %28 : vector<16x16xf32>
    %31 = arith.addf %29, %30 : vector<16x16xf32>
    %32 = math.sqrt %31 : vector<16x16xf32>
    %c0_8 = arith.constant 0 : index
    %c0_9 = arith.constant 0 : index
    %33 = vector.load %arg2[%c0_8, %c0_9] : memref<16x16xf32, #tpu.memory_space<vmem>>, vector<16x16xf32>
    tpu.vector_store %arg2[%c0_8, %c0_9], %32 {strides = array<i32>} : memref<16x16xf32, #tpu.memory_space<vmem>>, vector<16x16xf32>,
    return
  }
  func.func @transform_0(%arg0: i32) -> (i32, i32) {
    %c0_i32 = arith.constant 0 : i32
    %c0_i32_0 = arith.constant 0 : i32
    return %arg0, %c0_i32 : i32, i32
  }
  func.func @transform_1(%arg0: i32) -> (i32, i32) {
    %c0_i32 = arith.constant 0 : i32
    %c0_i32_0 = arith.constant 0 : i32
    return %arg0, %c0_i32 : i32, i32
  }
}

</mosaic_0001>

<llo_original>
// kernel: tpu_custom_call.1
$region0: #{tpu_custom_call.1}
  #allocation0 [shape = 'u32[]', space=smem, size = 0x4, offset = 0x4, fixed_abs, tag = 'smem constant byte address 0x4 - core index']
  #allocation1 [shape = 'u32[144,128]{1,0:T(1,128)}', space=vmem, size = 0x12000, scoped, tag = 'internal scratch']
  %s0 = inlined_call_operand.vmem [shape: f32[32,16], index: 0, kind: input, shape index: {}]
  %s1 = inlined_call_operand.vmem [shape: f32[32,16], index: 1, kind: output, shape index: {}]
  %s2 = sld [smem:[#allocation0]]
  $region37: #{tpu_custom_call.1} parent=0
    _
  %s4 = ssub.s32 1, %s2
  %s5 = scalar_select 0, %s4, %s2
  loop: start=0, step=1, limit=4
  $region2: #{tpu_custom_call.1} parent=0 // loop_pre_header
    _
  $region3: #{tpu_custom_call.1} parent=0 // loop_header
    %s7 = sphi 0, %s11
    %p8 = scmp.ge.s32.totalorder %s7, 4
    %s17 = sphi 0, %s19
    %s20 = sphi 0, %s17
    %s21 = sphi 0, %s20
    %s37 = sphi 0, %s21
    %s43 = sphi 0, %s45
    %s46 = sphi 0, %s43
    %s47 = sphi 0, %s46
    %s63 = sphi 0, %s47
  $region4: #{tpu_custom_call.1} parent=0 // loop_header_branch
    %10 = sbr.rel (%p8) target = $region8
  $region5: #{tpu_custom_call.1} parent=0 // loop_body
    %s12 = ssub.s32 %s7, 1
    %s13 = ssub.s32 %s7, 2
    %s14 = sadd.s32 %s7, 1
    %s15 = ssub.s32 %s7, %s14
    %p16 = scmp.eq.s32.totalorder %s15, 0
    %s18 = sadd.s32 %s17, 1
    %s19 = scalar_select %p16, %s17, %s18
    %p22 = pneg %p16
    %p23 = scmp.eq.s32.totalorder %s7, 1
    %p24 = por %p22, %p23
    %p25 = scmp.ne.s32.totalorder %s17, %s20
    %p26 = scmp.eq.s32.totalorder %s7, 0
    %p27 = por %p25, %p26
    %p28 = scmp.ne.s32.totalorder %s17, %s20
    %p29 = scmp.eq.s32.totalorder %s12, 1
    %p30 = por %p28, %p29
    %p31 = scmp.ne.s32.totalorder %s20, %s21
    %p32 = scmp.eq.s32.totalorder %s12, 0
    %p33 = por %p31, %p32
    %p34 = scmp.ne.s32.totalorder %s20, %s21
    %p35 = scmp.eq.s32.totalorder %s13, 1
    %p36 = por %p34, %p35
    %p38 = scmp.ne.s32.totalorder %s21, %s37
    %p39 = scmp.eq.s32.totalorder %s13, 0
    %p40 = por %p38, %p39
    %s41 = ssub.s32 %s7, %s14
    %p42 = scmp.eq.s32.totalorder %s41, 0
    %s44 = sadd.s32 %s43, 1
    %s45 = scalar_select %p42, %s43, %s44
    %p48 = pneg %p42
    %p49 = scmp.eq.s32.totalorder %s7, 1
    %p50 = por %p48, %p49
    %p51 = scmp.ne.s32.totalorder %s43, %s46
    %p52 = scmp.eq.s32.totalorder %s7, 0
    %p53 = por %p51, %p52
    %p54 = scmp.ne.s32.totalorder %s43, %s46
    %p55 = scmp.eq.s32.totalorder %s12, 1
    %p56 = por %p54, %p55
    %p57 = scmp.ne.s32.totalorder %s46, %s47
    %p58 = scmp.eq.s32.totalorder %s12, 0
    %p59 = por %p57, %p58
    %p60 = scmp.ne.s32.totalorder %s46, %s47
    %p61 = scmp.eq.s32.totalorder %s13, 1
    %p62 = por %p60, %p61
    %p64 = scmp.ne.s32.totalorder %s47, %s63
    %p65 = scmp.eq.s32.totalorder %s13, 0
    %p66 = por %p64, %p65
    %p67 = scmp.le.s32.totalorder 1, %s7
    %p68 = scmp.lt.s32.totalorder %s7, 3
    %p69 = pnand %p67, %p68
    %p70 = pneg %p69
    // Predicated region
    $region9: #{tpu_custom_call.1} parent=5 // pred_check
      _
    $region10: #{tpu_custom_call.1} parent=5 // pred_check_branch
      %72 = sbr.rel (%p69) target = $region12
    $region11: #{tpu_custom_call.1} parent=5 // pred_region
      %s73 = ssub.s32 %s7, 1
    $region12: #{tpu_custom_call.1} parent=5 // pred_fallthru
      _
    %p74 = scmp.lt.s32.totalorder %s7, 2
    // Predicated region
    $region13: #{tpu_custom_call.1} parent=5 // pred_check
      %p75 = pneg %p74
    $region14: #{tpu_custom_call.1} parent=5 // pred_check_branch
      %77 = sbr.rel (%p75) target = $region16
    $region15: #{tpu_custom_call.1} parent=5 // pred_region
      // Predicated region
      $region17: #{tpu_custom_call.1} parent=15 // pred_check
        %p78 = pneg %p27
      $region18: #{tpu_custom_call.1} parent=15 // pred_check_branch
        %80 = sbr.rel (%p78) target = $region20
      $region19: #{tpu_custom_call.1} parent=15 // pred_region
        %s81 = smul.u32 2, %s7
        %p82 = scmp.lt.s32.totalorder %s81, 3
        %s83 = scalar_select %p82, %s81, 3
        %s84 = smul.addr %s83, 8
        %s85 = scalar_lea.vmem %s0, %s84
        %s86 = smul.u32 2, %s7
      $region20: #{tpu_custom_call.1} parent=15 // pred_fallthru
        _
    $region16: #{tpu_custom_call.1} parent=5 // pred_fallthru
      _
    %p87 = scmp.le.s32.totalorder 1, %s7
    %p88 = scmp.lt.s32.totalorder %s7, 3
    %p89 = pnand %p87, %p88
    %p90 = pneg %p89
    // Predicated region
    $region21: #{tpu_custom_call.1} parent=5 // pred_check
      _
    $region22: #{tpu_custom_call.1} parent=5 // pred_check_branch
      %92 = sbr.rel (%p89) target = $region24
    $region23: #{tpu_custom_call.1} parent=5 // pred_region
      %s93 = ssub.s32 %s7, 1
      %s94 = smul.u32 2, %s12
      %p95 = scmp.lt.s32.totalorder %s94, 3
      %s96 = scalar_select %p95, %s94, 3
      %s97 = smul.addr %s96, 8
      %s98 = scalar_lea.vmem %s0, %s97
      %p99 = pneg %p33
      %p100 = pneg %p30
      %p101 = pneg %p59
      %p102 = pneg %p56
      %s103 = smul.u32 2, %s12
      %p104 = scmp.lt.s32.totalorder %s103, 3
      %s105 = scalar_select %p104, %s103, 3
      %s106 = smul.addr %s105, 8
      %s107 = scalar_lea.vmem %s1, %s106
      %s108 = smul.u32 2, %s12
      %p109 = scmp.lt.s32.totalorder %s108, 3
      %s110 = scalar_select %p109, %s108, 3
      %s111 = smul.addr %s110, 8
      %s112 = scalar_lea.vmem %s0, %s111
      %s113 = smul.u32 2, %s12
      %s114 = smul.u32 2, %s12
      %p115 = scmp.lt.s32.totalorder %s114, 3
      %s116 = scalar_select %p115, %s114, 3
      %s117 = smul.addr %s116, 8
      %s118 = scalar_lea.vmem %s1, %s117
      %s119 = smul.u32 2, %s12
      %v120 = vld [vmem:[%s112] sm:$0xff]
      %v121 = vld [vmem:[%s112 + $0x8] sm:$0xff]
      %vm124 = vcmask 1040384
      %v125 = vrot.slane %v120, 7
      %v126 = vrot.slane %v121, 7
      %v127 = vsel %vm124, %v125, %v126
      %v130 = vsel %vm124, 0.0, %v125
      %vm131 = vcmask 1046528
      %v132 = vrot.slane %v120, 1
      %v133 = vrot.slane %v121, 1
      %v134 = vsel %vm131, %v132, %v133
      %v137 = vsel %vm131, %v133, 0.0
      %v138 = vmul.f32 %v120, 2.0
      %v139 = vmul.f32 %v121, 2.0
      %v140 = vadd.f32 %v130, %v138
      %v141 = vadd.f32 %v127, %v139
      %v142 = vadd.f32 %v140, %v134
      %v143 = vadd.f32 %v141, %v137
      %v144 = vsub.f32 %v134, %v130
      %v145 = vsub.f32 %v137, %v127
      %148 = vrot.lane.b32.xlu0 %v142, 127
      %v149 = vpop.permute.xlu0 %148
      %150 = vrot.lane.b32.xlu0 %v143, 127
      %v151 = vpop.permute.xlu0 %150
      %vm154 = vcmask 121856
      %v155 = vsel %vm154, %v149, 0.0
      %v156 = vsel %vm154, %v151, 0.0
      %157 = vrot.lane.b32.xlu0 %v142, 1
      %v158 = vpop.permute.xlu0 %157
      %159 = vrot.lane.b32.xlu0 %v143, 1
      %v160 = vpop.permute.xlu0 %159
      %vm163 = vcmask 7168
      %v164 = vsel %vm163, 0.0, %v158
      %v165 = vsel %vm163, 0.0, %v160
      %v166 = vsub.f32 %v155, %v164
      %v167 = vsub.f32 %v156, %v165
      %170 = vrot.lane.b32.xlu0 %v144, 1
      %v171 = vpop.permute.xlu0 %170
      %172 = vrot.lane.b32.xlu0 %v145, 1
      %v173 = vpop.permute.xlu0 %172
      %v176 = vsel %vm163, 0.0, %v171
      %v177 = vsel %vm163, 0.0, %v173
      %v178 = vmul.f32 %v144, 2.0
      %v179 = vmul.f32 %v145, 2.0
      %v180 = vadd.f32 %v176, %v178
      %v181 = vadd.f32 %v177, %v179
      %182 = vrot.lane.b32.xlu0 %v144, 127
      %v183 = vpop.permute.xlu0 %182
      %184 = vrot.lane.b32.xlu0 %v145, 127
      %v185 = vpop.permute.xlu0 %184
      %v188 = vsel %vm154, %v183, 0.0
      %v189 = vsel %vm154, %v185, 0.0
      %v190 = vadd.f32 %v180, %v188
      %v191 = vadd.f32 %v181, %v189
      %v192 = vmul.f32 %v166, %v166
      %v193 = vmul.f32 %v167, %v167
      %v194 = vmul.f32 %v190, %v190
      %v195 = vmul.f32 %v191, %v191
      %v196 = vadd.f32 %v192, %v194
      %v197 = vadd.f32 %v193, %v195
      %v198 = vrsqrt.pop %v196
      %v199 = vmul.f32 %v196, %v198
      %vm200 = vcmp.eq.f32.partialorder %v196, inf
      %v201 = vsel %vm200, %v196, %v199
      %vm202 = vcmp.eq.f32.partialorder %v196, 0.0
      %v203 = vand.u32 %v196, 2147483648
      %v204 = vsel %vm202, %v203, %v201
      %v205 = vrsqrt.pop %v197
      %v206 = vmul.f32 %v197, %v205
      %vm207 = vcmp.eq.f32.partialorder %v197, inf
      %v208 = vsel %vm207, %v197, %v206
      %vm209 = vcmp.eq.f32.partialorder %v197, 0.0
      %v210 = vand.u32 %v197, 2147483648
      %v211 = vsel %vm209, %v210, %v208
      %vm212 = vcmask 130048
      %213 = vst.msk [vmem:[%s118] sm:$0xff] %vm212, %v204
      %214 = vst.msk [vmem:[%s118 + $0x8] sm:$0xff] %vm212, %v211
      %s215 = smul.u32 2, %s12
      %p216 = scmp.lt.s32.totalorder %s215, 3
      %s217 = scalar_select %p216, %s215, 3
      %s218 = smul.addr %s217, 8
      %s219 = scalar_lea.vmem %s1, %s218
      // Predicated region
      $region25: #{tpu_custom_call.1} parent=23 // pred_check
        %p220 = pneg %p56
      $region26: #{tpu_custom_call.1} parent=23 // pred_check_branch
        %222 = sbr.rel (%p220) target = $region28
      $region27: #{tpu_custom_call.1} parent=23 // pred_region
        %s223 = smul.u32 2, %s12
      $region28: #{tpu_custom_call.1} parent=23 // pred_fallthru
        _
    $region24: #{tpu_custom_call.1} parent=5 // pred_fallthru
      _
    %p224 = scmp.le.s32.totalorder 2, %s7
    // Predicated region
    $region29: #{tpu_custom_call.1} parent=5 // pred_check
      %p225 = pneg %p224
    $region30: #{tpu_custom_call.1} parent=5 // pred_check_branch
      %227 = sbr.rel (%p225) target = $region32
    $region31: #{tpu_custom_call.1} parent=5 // pred_region
      %s228 = ssub.s32 %s7, 2
      // Predicated region
      $region33: #{tpu_custom_call.1} parent=31 // pred_check
        %p229 = pneg %p62
      $region34: #{tpu_custom_call.1} parent=31 // pred_check_branch
        %231 = sbr.rel (%p229) target = $region36
      $region35: #{tpu_custom_call.1} parent=31 // pred_region
        %s232 = smul.u32 2, %s13
        %p233 = scmp.lt.s32.totalorder %s232, 3
        %s234 = scalar_select %p233, %s232, 3
        %s235 = smul.addr %s234, 8
        %s236 = scalar_lea.vmem %s1, %s235
      $region36: #{tpu_custom_call.1} parent=31 // pred_fallthru
        _
    $region32: #{tpu_custom_call.1} parent=5 // pred_fallthru
      _
  $region6: #{tpu_custom_call.1} parent=0 // loop_footer
    %s11 = sadd.s32 1, %s7
  $region7: #{tpu_custom_call.1} parent=0 // loop_footer_branch
    %6 = sbr.rel target = $region3
  $region8: #{tpu_custom_call.1} parent=0 // loop_exit
    _

</llo_original>
